<compile_context>
chip_gen: v6e
topology: v6e:2x2x1
jax: 0.10.0
libtpu: 0.0.40
codegen_flags: <defaults>
</compile_context>

<pallas_src>
import jax
import jax.numpy as jnp
from jax.experimental import pallas as pl
from jax.experimental.pallas import tpu as pltpu

INPUT_DIM = 20
OUTPUT_DIM = 10
NUM_EXPERTS = 6

OE = OUTPUT_DIM * NUM_EXPERTS        # 60 expert rows, output-major: row r = o*E + e
GATE_ROW0 = 64                       # gate rows start on an 8-sublane boundary
FUSED_ROWS = GATE_ROW0 + NUM_EXPERTS # 70 fused rows (60 expert | 4 zero-pad | 6 gate)
K_AUG = INPUT_DIM + 1                # +1 constant-one row folds biases into the matmul


def moe_kernel(xT_ref, wT_ref, rep_ref, red_ref, oT_ref):
    # xT_ref : (K_AUG, tb)            f32  x^T with a constant-1 row appended
    # wT_ref : (FUSED_ROWS, K_AUG)    f32  rows 0:60 experts (o-major, bias in col 20),
    #                                      rows 60:64 zero pad, rows 64:70 gate
    # rep_ref: (FUSED_ROWS, E)        f32  rep[r, e] = 1  iff r < 60 and r % E == e
    # red_ref: (O, FUSED_ROWS)        f32  red[o, r] = 1  iff r < 60 and r // E == o
    # oT_ref : (O, tb)                f32
    xT = xT_ref[...]

    # --- one fused MXU matmul: expert pre-activations + gate logits (bias folded) ---
    z = jnp.dot(wT_ref[...], xT, preferred_element_type=jnp.float32)      # (70, tb)

    # --- softmax over experts (per batch column; tiny sublane reductions) ---
    logits = z[GATE_ROW0:GATE_ROW0 + NUM_EXPERTS, :]                      # (6, tb)
    m = jnp.max(logits, axis=0, keepdims=True)
    ex = jnp.exp(logits - m)
    gates = ex * pl.reciprocal(jnp.sum(ex, axis=0, keepdims=True),
                               approx=False)                              # (6, tb)

    # --- ReLU on the whole fused block; pad/gate rows are zeroed by rep/red ---
    h = jnp.maximum(z, 0.0)                                               # (70, tb)

    # --- broadcast gate e to every row with r % E == e via a tiny MXU matmul
    #     (keeps the sublane replication off the XLU/VPU) ---
    gates_rep = jnp.dot(rep_ref[...], gates,
                        preferred_element_type=jnp.float32)               # (70, tb)

    weighted = h * gates_rep                                              # (70, tb)

    # --- reduce each group of E consecutive expert rows -> one output row (MXU) ---
    oT_ref[...] = jnp.dot(red_ref[...], weighted,
                          preferred_element_type=jnp.float32).astype(oT_ref.dtype)


def pack_params(gate_w, gate_b, expert_w, expert_b):
    """Pack all params into one feature-major (FUSED_ROWS, K_AUG) weight matrix
    (biases in the last column) plus the two constant indicator matrices."""
    # expert_w: (E, I, O), expert_b: (E, O)
    w_exp = jnp.transpose(expert_w, (2, 0, 1)).reshape(OE, INPUT_DIM)     # row o*E+e
    b_exp = jnp.transpose(expert_b, (1, 0)).reshape(OE, 1)
    exp_rows = jnp.concatenate([w_exp, b_exp], axis=1)                    # (60, 21)
    gate_rows = jnp.concatenate([gate_w.T, gate_b.T], axis=1)             # (6, 21)
    pad = jnp.zeros((GATE_ROW0 - OE, K_AUG), jnp.float32)                 # (4, 21)
    wT = jnp.concatenate([exp_rows, pad, gate_rows], axis=0)              # (70, 21)

    r = jnp.arange(FUSED_ROWS)
    rep = ((r[:, None] < OE)
           & (r[:, None] % NUM_EXPERTS == jnp.arange(NUM_EXPERTS)[None, :])
           ).astype(jnp.float32)                                          # (70, 6)
    red = ((r[None, :] < OE)
           & (r[None, :] // NUM_EXPERTS == jnp.arange(OUTPUT_DIM)[:, None])
           ).astype(jnp.float32)                                          # (10, 70)
    return wT, rep, red


def _pick_tile_b(B, tile_b):
    if B <= 128:
        return B                      # single block spanning the full batch dim
    tb = min(tile_b, B)
    # keep >= 2 grid steps where possible so both v7x TensorCores get work
    half = ((pl.cdiv(B, 2) + 127) // 128) * 128
    tb = min(tb, half)
    return max(128, (tb // 128) * 128)  # lane-dim blocks must be multiples of 128


def moe_forward(x, wT, rep, red, *, tile_b=8192):
    B = x.shape[0]
    tb = _pick_tile_b(B, tile_b)
    grid = (pl.cdiv(B, tb),)
    # Feature-major layout: lane (fast) axis = batch -> lane-dense compute,
    # unmasked stores.  Transposes here are wrapper-side layout plumbing.
    xT = jnp.concatenate([x.T, jnp.ones((1, B), x.dtype)], axis=0)        # (21, B)
    outT = pl.pallas_call(
        moe_kernel,
        out_shape=jax.ShapeDtypeStruct((OUTPUT_DIM, B), jnp.float32),
        grid=grid,
        in_specs=[
            pl.BlockSpec((K_AUG, tb), lambda i: (0, i)),
            pl.BlockSpec((FUSED_ROWS, K_AUG), lambda i: (0, 0)),
            pl.BlockSpec((FUSED_ROWS, NUM_EXPERTS), lambda i: (0, 0)),
            pl.BlockSpec((OUTPUT_DIM, FUSED_ROWS), lambda i: (0, 0)),
        ],
        out_specs=pl.BlockSpec((OUTPUT_DIM, tb), lambda i: (0, i)),
        compiler_params=pltpu.CompilerParams(
            dimension_semantics=("parallel",),
            vmem_limit_bytes=32 * 1024 * 1024),
    )(xT, wT, rep, red)
    return outT.T                                                         # (B, O)


def init_params(key):
    """Deterministic init mimicking nn.Linear (uniform +-1/sqrt(fan_in))."""
    k1, k2, k3, k4, k5 = jax.random.split(key, 5)
    bound = 1.0 / jnp.sqrt(jnp.float32(INPUT_DIM))
    gate_w = jax.random.uniform(k1, (INPUT_DIM, NUM_EXPERTS), jnp.float32, -bound, bound)
    gate_b = jax.random.uniform(k2, (1, NUM_EXPERTS), jnp.float32, -bound, bound)
    expert_w = jax.random.uniform(k3, (NUM_EXPERTS, INPUT_DIM, OUTPUT_DIM),
                                  jnp.float32, -bound, bound)
    expert_b = jax.random.uniform(k4, (NUM_EXPERTS, OUTPUT_DIM),
                                  jnp.float32, -bound, bound)
    return gate_w, gate_b, expert_w, expert_b, k5


def moe_reference(x, gate_w, gate_b, expert_w, expert_b):
    logits = x @ gate_w + gate_b
    gates = jax.nn.softmax(logits, axis=1)                                # (B, E)
    eo = jnp.maximum(jnp.einsum("bi,eio->beo", x, expert_w)
                     + expert_b[None, :, :], 0.0)                         # (B, E, O)
    return jnp.sum(gates[:, :, None] * eo, axis=1)                        # (B, O)


if __name__ == "__main__":
    key = jax.random.PRNGKey(0)
    gate_w, gate_b, expert_w, expert_b, kx = init_params(key)
    wT, rep, red = pack_params(gate_w, gate_b, expert_w, expert_b)

    B = 8
    x = jax.random.normal(kx, (B, INPUT_DIM), jnp.float32)

    out = moe_forward(x, wT, rep, red)
    out = jax.block_until_ready(out)

    ref = moe_reference(x, gate_w, gate_b, expert_w, expert_b)
    assert out.shape == (B, OUTPUT_DIM)
    assert jnp.allclose(out, ref, atol=1e-5, rtol=1e-5)

    print("KERNEL_OK")
</pallas_src>

<mosaic_0001>
module attributes {stable_mosaic.version = 11 : i64} {
  func.func @moe_kernel(%arg0: i32, %arg1: memref<21x8xf32, #tpu.memory_space<vmem>>, %arg2: memref<70x21xf32, #tpu.memory_space<vmem>>, %arg3: memref<70x6xf32, #tpu.memory_space<vmem>>, %arg4: memref<10x70xf32, #tpu.memory_space<vmem>>, %arg5: memref<10x8xf32, #tpu.memory_space<vmem>>) attributes {dimension_semantics = [#tpu.dimension_semantics<parallel>], iteration_bounds = array<i64: 1>, scalar_prefetch = 0 : i64, scratch_operands = 0 : i64, tpu.core_type = #tpu.core_type<tc>, window_params = [{transform_indices = @transform_0, window_bounds = array<i64: 21, 8>}, {pipeline_mode = #tpu.pipeline_mode<synchronous>, transform_indices = @transform_1, window_bounds = array<i64: 70, 21>}, {pipeline_mode = #tpu.pipeline_mode<synchronous>, transform_indices = @transform_2, window_bounds = array<i64: 70, 6>}, {pipeline_mode = #tpu.pipeline_mode<synchronous>, transform_indices = @transform_3, window_bounds = array<i64: 10, 70>}, {transform_indices = @transform_4, window_bounds = array<i64: 10, 8>}]} {
    %c0 = arith.constant 0 : index
    %c0_0 = arith.constant 0 : index
    %0 = vector.load %arg1[%c0, %c0_0] : memref<21x8xf32, #tpu.memory_space<vmem>>, vector<21x8xf32>
    %c0_1 = arith.constant 0 : index
    %c0_2 = arith.constant 0 : index
    %1 = vector.load %arg2[%c0_1, %c0_2] : memref<70x21xf32, #tpu.memory_space<vmem>>, vector<70x21xf32>
    %cst = arith.constant dense<0.000000e+00> : vector<70x8xf32>
    %2 = tpu.matmul %1, %0, %cst {dimension_numbers = #tpu.dot_dimension_numbers<[1], [0], [0], [1], [0, 0, 1, 1], [], []>} : vector<70x21xf32>, vector<21x8xf32>, vector<70x8xf32> -> vector<70x8xf32>
    %3 = vector.extract_strided_slice %2 {offsets = [64, 0], sizes = [6, 8], strides = [1, 1]} : vector<70x8xf32> to vector<6x8xf32>
    %cst_3 = arith.constant dense<0xFF800000> : vector<8xf32>
    %4 = vector.multi_reduction <maximumf>, %3, %cst_3 [0] : vector<6x8xf32> to vector<8xf32>
    %5 = vector.shape_cast %4 : vector<8xf32> to vector<1x8xf32>
    %6 = vector.broadcast %5 : vector<1x8xf32> to vector<6x8xf32>
    %7 = arith.subf %3, %6 : vector<6x8xf32>
    %8 = math.exp %7 : vector<6x8xf32>
    %cst_4 = arith.constant dense<0.000000e+00> : vector<8xf32>
    %9 = vector.multi_reduction <add>, %8, %cst_4 [0] : vector<6x8xf32> to vector<8xf32>
    %10 = vector.shape_cast %9 : vector<8xf32> to vector<1x8xf32>
    %11 = tpu.reciprocal %10 : vector<1x8xf32> -> vector<1x8xf32>
    %12 = vector.broadcast %11 : vector<1x8xf32> to vector<6x8xf32>
    %13 = arith.mulf %8, %12 : vector<6x8xf32>
    %cst_5 = arith.constant 0.000000e+00 : f32
    %14 = vector.broadcast %cst_5 : f32 to vector<70x8xf32>
    %15 = arith.maximumf %2, %14 : vector<70x8xf32>
    %c0_6 = arith.constant 0 : index
    %c0_7 = arith.constant 0 : index
    %16 = vector.load %arg3[%c0_6, %c0_7] : memref<70x6xf32, #tpu.memory_space<vmem>>, vector<70x6xf32>
    %cst_8 = arith.constant dense<0.000000e+00> : vector<70x8xf32>
    %17 = tpu.matmul %16, %13, %cst_8 {dimension_numbers = #tpu.dot_dimension_numbers<[1], [0], [0], [1], [0, 0, 1, 1], [], []>} : vector<70x6xf32>, vector<6x8xf32>, vector<70x8xf32> -> vector<70x8xf32>
    %18 = arith.mulf %15, %17 : vector<70x8xf32>
    %c0_9 = arith.constant 0 : index
    %c0_10 = arith.constant 0 : index
    %19 = vector.load %arg4[%c0_9, %c0_10] : memref<10x70xf32, #tpu.memory_space<vmem>>, vector<10x70xf32>
    %cst_11 = arith.constant dense<0.000000e+00> : vector<10x8xf32>
    %20 = tpu.matmul %19, %18, %cst_11 {dimension_numbers = #tpu.dot_dimension_numbers<[1], [0], [0], [1], [0, 0, 1, 1], [], []>} : vector<10x70xf32>, vector<70x8xf32>, vector<10x8xf32> -> vector<10x8xf32>
    %c0_12 = arith.constant 0 : index
    %c0_13 = arith.constant 0 : index
    %21 = vector.load %arg5[%c0_12, %c0_13] : memref<10x8xf32, #tpu.memory_space<vmem>>, vector<10x8xf32>
    tpu.vector_store %arg5[%c0_12, %c0_13], %20 {strides = array<i32>} : memref<10x8xf32, #tpu.memory_space<vmem>>, vector<10x8xf32>,
    return
  }
  func.func @transform_0(%arg0: i32) -> (i32, i32) {
    %c0_i32 = arith.constant 0 : i32
    %c0_i32_0 = arith.constant 0 : i32
    return %c0_i32, %arg0 : i32, i32
  }
  func.func @transform_1(%arg0: i32) -> (i32, i32) {
    %c0_i32 = arith.constant 0 : i32
    %c0_i32_0 = arith.constant 0 : i32
    %c0_i32_1 = arith.constant 0 : i32
    return %c0_i32, %c0_i32_0 : i32, i32
  }
  func.func @transform_2(%arg0: i32) -> (i32, i32) {
    %c0_i32 = arith.constant 0 : i32
    %c0_i32_0 = arith.constant 0 : i32
    %c0_i32_1 = arith.constant 0 : i32
    return %c0_i32, %c0_i32_0 : i32, i32
  }
  func.func @transform_3(%arg0: i32) -> (i32, i32) {
    %c0_i32 = arith.constant 0 : i32
    %c0_i32_0 = arith.constant 0 : i32
    %c0_i32_1 = arith.constant 0 : i32
    return %c0_i32, %c0_i32_0 : i32, i32
  }
  func.func @transform_4(%arg0: i32) -> (i32, i32) {
    %c0_i32 = arith.constant 0 : i32
    %c0_i32_0 = arith.constant 0 : i32
    return %c0_i32, %arg0 : i32, i32
  }
}

</mosaic_0001>

<llo_original>
// kernel: tpu_custom_call.1
$region0: #{tpu_custom_call.1}
  #allocation0 [shape = 'u32[]', space=smem, size = 0x4, offset = 0x4, fixed_abs, tag = 'smem constant byte address 0x4 - core index']
  #allocation1 [shape = 'u32[144,128]{1,0:T(1,128)}', space=vmem, size = 0x12000, scoped, tag = 'internal scratch']
  %s0 = inlined_call_operand.vmem [shape: f32[21,8], index: 0, kind: input, shape index: {}]
  %s1 = inlined_call_operand.vmem [shape: f32[70,21], index: 1, kind: input, shape index: {}]
  %s2 = inlined_call_operand.vmem [shape: f32[70,6], index: 2, kind: input, shape index: {}]
  %s3 = inlined_call_operand.vmem [shape: f32[10,70], index: 3, kind: input, shape index: {}]
  %s4 = inlined_call_operand.vmem [shape: f32[10,8], index: 4, kind: output, shape index: {}]
  %s5 = sld [smem:[#allocation0]]
  $region26: #{tpu_custom_call.1} parent=0
    _
  %s7 = ssub.s32 1, %s5
  %s8 = scalar_select 0, %s7, %s5
  // Predicated region
  $region2: #{tpu_custom_call.1} parent=0 // pred_check
    _
  $region3: #{tpu_custom_call.1} parent=0 // pred_check_branch
    %10 = sbr.rel (0) target = $region5
  $region4: #{tpu_custom_call.1} parent=0 // pred_region
    _
  $region5: #{tpu_custom_call.1} parent=0 // pred_fallthru
    _
  // Predicated region
  $region6: #{tpu_custom_call.1} parent=0 // pred_check
    _
  $region7: #{tpu_custom_call.1} parent=0 // pred_check_branch
    %12 = sbr.rel (0) target = $region9
  $region8: #{tpu_custom_call.1} parent=0 // pred_region
    _
  $region9: #{tpu_custom_call.1} parent=0 // pred_fallthru
    _
  // Predicated region
  $region10: #{tpu_custom_call.1} parent=0 // pred_check
    _
  $region11: #{tpu_custom_call.1} parent=0 // pred_check_branch
    %14 = sbr.rel (0) target = $region13
  $region12: #{tpu_custom_call.1} parent=0 // pred_region
    _
  $region13: #{tpu_custom_call.1} parent=0 // pred_fallthru
    _
  // Predicated region
  $region14: #{tpu_custom_call.1} parent=0 // pred_check
    _
  $region15: #{tpu_custom_call.1} parent=0 // pred_check_branch
    %16 = sbr.rel (0) target = $region17
  $region16: #{tpu_custom_call.1} parent=0 // pred_region
    _
  $region17: #{tpu_custom_call.1} parent=0 // pred_fallthru
    _
  %v17 = vld [vmem:[%s0] sm:$0xff]
  %v18 = vld [vmem:[%s0 + $0x8] sm:$0xff]
  %v19 = vld [vmem:[%s0 + $0x10] sm:$0x1f]
  %v20 = vld [vmem:[%s1] sm:$0xff]
  %v21 = vld [vmem:[%s1 + $0x8] sm:$0xff]
  %v22 = vld [vmem:[%s1 + $0x10] sm:$0xff]
  %v23 = vld [vmem:[%s1 + $0x18] sm:$0xff]
  %v24 = vld [vmem:[%s1 + $0x20] sm:$0xff]
  %v25 = vld [vmem:[%s1 + $0x28] sm:$0xff]
  %v26 = vld [vmem:[%s1 + $0x30] sm:$0xff]
  %v27 = vld [vmem:[%s1 + $0x38] sm:$0xff]
  %v28 = vld [vmem:[%s1 + $0x40] sm:$0x3f]
  %vm29 = vcmask 171008
  %v31 = vsel %vm29, %v20, 0
  %v34 = vsel %vm29, %v21, 0
  %v37 = vsel %vm29, %v22, 0
  %v40 = vsel %vm29, %v23, 0
  %v43 = vsel %vm29, %v24, 0
  %v46 = vsel %vm29, %v25, 0
  %v49 = vsel %vm29, %v26, 0
  %v52 = vsel %vm29, %v27, 0
  %v55 = vsel %vm29, %v28, 0
  %vm57 = vcmask 1044480
  %v59 = vsel %vm57, %v19, 0
  %61 = vmatprep.subr.mxu0 0.0
  %62 = vmatpush1.msra.mxu0 0.0
  %63 = vmatprep.subr.mxu0 0.0
  %64 = vmatpush1.msra.mxu0 0.0
  %65 = vmatprep.subr.mxu0 0.0
  %66 = vmatpush1.msra.mxu0 0.0
  %67 = vmatprep.subr.mxu0 0.0
  %68 = vmatpush1.msra.mxu0 0.0
  %69 = vmatprep.subr.mxu0 0.0
  %70 = vmatpush1.msra.mxu0 0.0
  %71 = vmatprep.subr.mxu0 0.0
  %72 = vmatpush1.msra.mxu0 0.0
  %73 = vmatprep.subr.mxu0 0.0
  %74 = vmatpush1.msra.mxu0 0.0
  %75 = vmatprep.subr.mxu0 0.0
  %76 = vmatpush1.msra.mxu0 0.0
  %77 = vmatprep.subr.mxu0 0.0
  %78 = vmatpush1.msra.mxu0 0.0
  %79 = vmatprep.subr.mxu0 0.0
  %80 = vmatpush1.msra.mxu0 0.0
  %81 = vmatprep.subr.mxu0 0.0
  %82 = vmatpush1.msra.mxu0 0.0
  %83 = vmatprep.subr.mxu0 0.0
  %84 = vmatpush1.msra.mxu0 0.0
  %85 = vmatprep.subr.mxu0 0.0
  %86 = vmatpush1.msra.mxu0 0.0
  %87 = vmatprep.subr.mxu0 0.0
  %88 = vmatpush1.msra.mxu0 %v59
  %89 = vmatprep.subr.mxu0 0.0
  %90 = vmatpush1.msra.mxu0 %v18
  %91 = vmatprep.subr.mxu0 0.0
  %92 = vmatpush1.msra.mxu0 %v17
  %93 = vmatprep.subr.mxu0 0.0
  %94 = vmatpush2.msra.mxu0 0.0
  %95 = vmatprep.subr.mxu0 0.0
  %96 = vmatpush2.msra.mxu0 0.0
  %97 = vmatprep.subr.mxu0 0.0
  %98 = vmatpush2.msra.mxu0 0.0
  %99 = vmatprep.subr.mxu0 0.0
  %100 = vmatpush2.msra.mxu0 0.0
  %101 = vmatprep.subr.mxu0 0.0
  %102 = vmatpush2.msra.mxu0 0.0
  %103 = vmatprep.subr.mxu0 0.0
  %104 = vmatpush2.msra.mxu0 0.0
  %105 = vmatprep.subr.mxu0 0.0
  %106 = vmatpush2.msra.mxu0 0.0
  %107 = vmatprep.subr.mxu0 0.0
  %108 = vmatpush2.msra.mxu0 0.0
  %109 = vmatprep.subr.mxu0 0.0
  %110 = vmatpush2.msra.mxu0 0.0
  %111 = vmatprep.subr.mxu0 0.0
  %112 = vmatpush2.msra.mxu0 0.0
  %113 = vmatprep.subr.mxu0 0.0
  %114 = vmatpush2.msra.mxu0 0.0
  %115 = vmatprep.subr.mxu0 0.0
  %116 = vmatpush2.msra.mxu0 0.0
  %117 = vmatprep.subr.mxu0 0.0
  %118 = vmatpush2.msra.mxu0 0.0
  %119 = vmatprep.subr.mxu0 0.0
  %120 = vmatpush2.msra.mxu0 0.0
  %121 = vmatprep.subr.mxu0 0.0
  %122 = vmatpush2.msra.mxu0 0.0
  %123 = vmatprep.subr.mxu0 0.0
  %124 = vmatpush2.msra.mxu0 0.0
  %125 = vmatprep.mubr.f32.mxu0 0.0
  %126 = vmatmul.mubr.f32.gmra.mxu0 %v31
  %v127 = vpop.f32.mrf.mxu0
  %v128 = vadd.f32 0.0, %v127
  %v129 = vpop.f32.mrf.mxu0
  %130 = vmatprep.mubr.f32.mxu0 0.0
  %131 = vmatmul.mubr.f32.gmra.mxu0 %v34
  %v132 = vpop.f32.mrf.mxu0
  %v133 = vadd.f32 0.0, %v132
  %v134 = vpop.f32.mrf.mxu0
  %135 = vmatprep.mubr.f32.mxu0 0.0
  %136 = vmatmul.mubr.f32.gmra.mxu0 %v37
  %v137 = vpop.f32.mrf.mxu0
  %v138 = vadd.f32 0.0, %v137
  %v139 = vpop.f32.mrf.mxu0
  %140 = vmatprep.mubr.f32.mxu0 0.0
  %141 = vmatmul.mubr.f32.gmra.mxu0 %v40
  %v142 = vpop.f32.mrf.mxu0
  %v143 = vadd.f32 0.0, %v142
  %v144 = vpop.f32.mrf.mxu0
  %145 = vmatprep.mubr.f32.mxu0 0.0
  %146 = vmatmul.mubr.f32.gmra.mxu0 %v43
  %v147 = vpop.f32.mrf.mxu0
  %v148 = vadd.f32 0.0, %v147
  %v149 = vpop.f32.mrf.mxu0
  %150 = vmatprep.mubr.f32.mxu0 0.0
  %151 = vmatmul.mubr.f32.gmra.mxu0 %v46
  %v152 = vpop.f32.mrf.mxu0
  %v153 = vadd.f32 0.0, %v152
  %v154 = vpop.f32.mrf.mxu0
  %155 = vmatprep.mubr.f32.mxu0 0.0
  %156 = vmatmul.mubr.f32.gmra.mxu0 %v49
  %v157 = vpop.f32.mrf.mxu0
  %v158 = vadd.f32 0.0, %v157
  %v159 = vpop.f32.mrf.mxu0
  %160 = vmatprep.mubr.f32.mxu0 0.0
  %161 = vmatmul.mubr.f32.gmra.mxu0 %v52
  %v162 = vpop.f32.mrf.mxu0
  %v163 = vadd.f32 0.0, %v162
  %v164 = vpop.f32.mrf.mxu0
  %165 = vmatprep.mubr.f32.mxu0 0.0
  %166 = vmatmul.mubr.f32.gmra.mxu0 %v55
  %v167 = vpop.f32.mrf.mxu0
  %v168 = vadd.f32 0.0, %v167
  %v169 = vpop.f32.mrf.mxu0
  %170 = vdwg.mxu0
  %vm171 = vcmask 62464
  %v172 = vsel %vm171, %v168, -inf
  %v173 = vrot.slane %v172, 4
  %v174 = vmax.f32 %v172, %v173
  %v175 = vrot.slane %v174, 2
  %v176 = vmax.f32 %v174, %v175
  %v177 = vrot.slane %v176, 1
  %v178 = vmax.f32 %v176, %v177
  %v179 = vsub.f32 %v168, %v178
  %v180 = vmul.f32 %v179, 1.442695
  %v181 = vpow.pop %v180
  %v182 = vsel %vm171, %v181, 0.0
  %v183 = vrot.slane %v182, 4
  %v184 = vadd.f32 %v182, %v183
  %v185 = vrot.slane %v184, 2
  %v186 = vadd.f32 %v184, %v185
  %v187 = vrot.slane %v186, 1
  %v188 = vadd.f32 %v186, %v187
  %v189 = vrcp.pop %v188
  %v190 = vmul.f32 %v181, %v189
  %v191 = vmax.f32 %v128, 0.0
  %v192 = vmax.f32 %v133, 0.0
  %v193 = vmax.f32 %v138, 0.0
  %v194 = vmax.f32 %v143, 0.0
  %v195 = vmax.f32 %v148, 0.0
  %v196 = vmax.f32 %v153, 0.0
  %v197 = vmax.f32 %v158, 0.0
  %v198 = vmax.f32 %v163, 0.0
  %v199 = vmax.f32 %v168, 0.0
  %v200 = vld [vmem:[%s2] sm:$0xff]
  %v201 = vld [vmem:[%s2 + $0x8] sm:$0xff]
  %v202 = vld [vmem:[%s2 + $0x10] sm:$0xff]
  %v203 = vld [vmem:[%s2 + $0x18] sm:$0xff]
  %v204 = vld [vmem:[%s2 + $0x20] sm:$0xff]
  %v205 = vld [vmem:[%s2 + $0x28] sm:$0xff]
  %v206 = vld [vmem:[%s2 + $0x30] sm:$0xff]
  %v207 = vld [vmem:[%s2 + $0x38] sm:$0xff]
  %v208 = vld [vmem:[%s2 + $0x40] sm:$0x3f]
  %vm209 = vcmask 48128
  %v211 = vsel %vm209, %v200, 0
  %v214 = vsel %vm209, %v201, 0
  %v217 = vsel %vm209, %v202, 0
  %v220 = vsel %vm209, %v203, 0
  %v223 = vsel %vm209, %v204, 0
  %v226 = vsel %vm209, %v205, 0
  %v229 = vsel %vm209, %v206, 0
  %v232 = vsel %vm209, %v207, 0
  %v235 = vsel %vm209, %v208, 0
  %vm237 = vcmask 1045504
  %v239 = vsel %vm237, %v190, 0
  %241 = vmatprep.subr.mxu0 0.0
  %242 = vmatpush1.msra.mxu0 0.0
  %243 = vmatprep.subr.mxu0 0.0
  %244 = vmatpush1.msra.mxu0 0.0
  %245 = vmatprep.subr.mxu0 0.0
  %246 = vmatpush1.msra.mxu0 0.0
  %247 = vmatprep.subr.mxu0 0.0
  %248 = vmatpush1.msra.mxu0 0.0
  %249 = vmatprep.subr.mxu0 0.0
  %250 = vmatpush1.msra.mxu0 0.0
  %251 = vmatprep.subr.mxu0 0.0
  %252 = vmatpush1.msra.mxu0 0.0
  %253 = vmatprep.subr.mxu0 0.0
  %254 = vmatpush1.msra.mxu0 0.0
  %255 = vmatprep.subr.mxu0 0.0
  %256 = vmatpush1.msra.mxu0 0.0
  %257 = vmatprep.subr.mxu0 0.0
  %258 = vmatpush1.msra.mxu0 0.0
  %259 = vmatprep.subr.mxu0 0.0
  %260 = vmatpush1.msra.mxu0 0.0
  %261 = vmatprep.subr.mxu0 0.0
  %262 = vmatpush1.msra.mxu0 0.0
  %263 = vmatprep.subr.mxu0 0.0
  %264 = vmatpush1.msra.mxu0 0.0
  %265 = vmatprep.subr.mxu0 0.0
  %266 = vmatpush1.msra.mxu0 0.0
  %267 = vmatprep.subr.mxu0 0.0
  %268 = vmatpush1.msra.mxu0 0.0
  %269 = vmatprep.subr.mxu0 0.0
  %270 = vmatpush1.msra.mxu0 0.0
  %271 = vmatprep.subr.mxu0 0.0
  %272 = vmatpush1.msra.mxu0 %v239
  %273 = vmatprep.subr.mxu0 0.0
  %274 = vmatpush2.msra.mxu0 0.0
  %275 = vmatprep.subr.mxu0 0.0
  %276 = vmatpush2.msra.mxu0 0.0
  %277 = vmatprep.subr.mxu0 0.0
  %278 = vmatpush2.msra.mxu0 0.0
  %279 = vmatprep.subr.mxu0 0.0
  %280 = vmatpush2.msra.mxu0 0.0
  %281 = vmatprep.subr.mxu0 0.0
  %282 = vmatpush2.msra.mxu0 0.0
  %283 = vmatprep.subr.mxu0 0.0
  %284 = vmatpush2.msra.mxu0 0.0
  %285 = vmatprep.subr.mxu0 0.0
  %286 = vmatpush2.msra.mxu0 0.0
  %287 = vmatprep.subr.mxu0 0.0
  %288 = vmatpush2.msra.mxu0 0.0
  %289 = vmatprep.subr.mxu0 0.0
  %290 = vmatpush2.msra.mxu0 0.0
  %291 = vmatprep.subr.mxu0 0.0
  %292 = vmatpush2.msra.mxu0 0.0
  %293 = vmatprep.subr.mxu0 0.0
  %294 = vmatpush2.msra.mxu0 0.0
  %295 = vmatprep.subr.mxu0 0.0
  %296 = vmatpush2.msra.mxu0 0.0
  %297 = vmatprep.subr.mxu0 0.0
  %298 = vmatpush2.msra.mxu0 0.0
  %299 = vmatprep.subr.mxu0 0.0
  %300 = vmatpush2.msra.mxu0 0.0
  %301 = vmatprep.subr.mxu0 0.0
  %302 = vmatpush2.msra.mxu0 0.0
  %303 = vmatprep.subr.mxu0 0.0
  %304 = vmatpush2.msra.mxu0 0.0
  %305 = vmatprep.mubr.f32.mxu0 0.0
  %306 = vmatmul.mubr.f32.gmra.mxu0 %v211
  %v307 = vpop.f32.mrf.mxu0
  %v308 = vadd.f32 0.0, %v307
  %v309 = vpop.f32.mrf.mxu0
  %310 = vmatprep.mubr.f32.mxu0 0.0
  %311 = vmatmul.mubr.f32.gmra.mxu0 %v214
  %v312 = vpop.f32.mrf.mxu0
  %v313 = vadd.f32 0.0, %v312
  %v314 = vpop.f32.mrf.mxu0
  %315 = vmatprep.mubr.f32.mxu0 0.0
  %316 = vmatmul.mubr.f32.gmra.mxu0 %v217
  %v317 = vpop.f32.mrf.mxu0
  %v318 = vadd.f32 0.0, %v317
  %v319 = vpop.f32.mrf.mxu0
  %320 = vmatprep.mubr.f32.mxu0 0.0
  %321 = vmatmul.mubr.f32.gmra.mxu0 %v220
  %v322 = vpop.f32.mrf.mxu0
  %v323 = vadd.f32 0.0, %v322
  %v324 = vpop.f32.mrf.mxu0
  %325 = vmatprep.mubr.f32.mxu0 0.0
  %326 = vmatmul.mubr.f32.gmra.mxu0 %v223
  %v327 = vpop.f32.mrf.mxu0
  %v328 = vadd.f32 0.0, %v327
  %v329 = vpop.f32.mrf.mxu0
  %330 = vmatprep.mubr.f32.mxu0 0.0
  %331 = vmatmul.mubr.f32.gmra.mxu0 %v226
  %v332 = vpop.f32.mrf.mxu0
  %v333 = vadd.f32 0.0, %v332
  %v334 = vpop.f32.mrf.mxu0
  %335 = vmatprep.mubr.f32.mxu0 0.0
  %336 = vmatmul.mubr.f32.gmra.mxu0 %v229
  %v337 = vpop.f32.mrf.mxu0
  %v338 = vadd.f32 0.0, %v337
  %v339 = vpop.f32.mrf.mxu0
  %340 = vmatprep.mubr.f32.mxu0 0.0
  %341 = vmatmul.mubr.f32.gmra.mxu0 %v232
  %v342 = vpop.f32.mrf.mxu0
  %v343 = vadd.f32 0.0, %v342
  %v344 = vpop.f32.mrf.mxu0
  %345 = vmatprep.mubr.f32.mxu0 0.0
  %346 = vmatmul.mubr.f32.gmra.mxu0 %v235
  %v347 = vpop.f32.mrf.mxu0
  %v348 = vadd.f32 0.0, %v347
  %v349 = vpop.f32.mrf.mxu0
  %350 = vdwg.mxu0
  %v351 = vmul.f32 %v191, %v308
  %v352 = vmul.f32 %v192, %v313
  %v353 = vmul.f32 %v193, %v318
  %v354 = vmul.f32 %v194, %v323
  %v355 = vmul.f32 %v195, %v328
  %v356 = vmul.f32 %v196, %v333
  %v357 = vmul.f32 %v197, %v338
  %v358 = vmul.f32 %v198, %v343
  %v359 = vmul.f32 %v199, %v348
  %v360 = vld [vmem:[%s3] sm:$0xff]
  %v361 = vld [vmem:[%s3 + $0x8] sm:$0x3]
  %vm362 = vcmask 572416
  %v364 = vsel %vm362, %v360, 0
  %v367 = vsel %vm362, %v361, 0
  %v370 = vsel %vm237, %v359, 0
  %372 = vmatprep.subr.mxu0 0.0
  %373 = vmatpush1.msra.mxu0 0.0
  %374 = vmatprep.subr.mxu0 0.0
  %375 = vmatpush1.msra.mxu0 0.0
  %376 = vmatprep.subr.mxu0 0.0
  %377 = vmatpush1.msra.mxu0 0.0
  %378 = vmatprep.subr.mxu0 0.0
  %379 = vmatpush1.msra.mxu0 0.0
  %380 = vmatprep.subr.mxu0 0.0
  %381 = vmatpush1.msra.mxu0 0.0
  %382 = vmatprep.subr.mxu0 0.0
  %383 = vmatpush1.msra.mxu0 0.0
  %384 = vmatprep.subr.mxu0 0.0
  %385 = vmatpush1.msra.mxu0 0.0
  %386 = vmatprep.subr.mxu0 0.0
  %387 = vmatpush1.msra.mxu0 %v370
  %388 = vmatprep.subr.mxu0 0.0
  %389 = vmatpush1.msra.mxu0 %v358
  %390 = vmatprep.subr.mxu0 0.0
  %391 = vmatpush1.msra.mxu0 %v357
  %392 = vmatprep.subr.mxu0 0.0
  %393 = vmatpush1.msra.mxu0 %v356
  %394 = vmatprep.subr.mxu0 0.0
  %395 = vmatpush1.msra.mxu0 %v355
  %396 = vmatprep.subr.mxu0 0.0
  %397 = vmatpush1.msra.mxu0 %v354
  %398 = vmatprep.subr.mxu0 0.0
  %399 = vmatpush1.msra.mxu0 %v353
  %400 = vmatprep.subr.mxu0 0.0
  %401 = vmatpush1.msra.mxu0 %v352
  %402 = vmatprep.subr.mxu0 0.0
  %403 = vmatpush1.msra.mxu0 %v351
  %404 = vmatprep.subr.mxu0 0.0
  %405 = vmatpush2.msra.mxu0 0.0
  %406 = vmatprep.subr.mxu0 0.0
  %407 = vmatpush2.msra.mxu0 0.0
  %408 = vmatprep.subr.mxu0 0.0
  %409 = vmatpush2.msra.mxu0 0.0
  %410 = vmatprep.subr.mxu0 0.0
  %411 = vmatpush2.msra.mxu0 0.0
  %412 = vmatprep.subr.mxu0 0.0
  %413 = vmatpush2.msra.mxu0 0.0
  %414 = vmatprep.subr.mxu0 0.0
  %415 = vmatpush2.msra.mxu0 0.0
  %416 = vmatprep.subr.mxu0 0.0
  %417 = vmatpush2.msra.mxu0 0.0
  %418 = vmatprep.subr.mxu0 0.0
  %419 = vmatpush2.msra.mxu0 0.0
  %420 = vmatprep.subr.mxu0 0.0
  %421 = vmatpush2.msra.mxu0 0.0
  %422 = vmatprep.subr.mxu0 0.0
  %423 = vmatpush2.msra.mxu0 0.0
  %424 = vmatprep.subr.mxu0 0.0
  %425 = vmatpush2.msra.mxu0 0.0
  %426 = vmatprep.subr.mxu0 0.0
  %427 = vmatpush2.msra.mxu0 0.0
  %428 = vmatprep.subr.mxu0 0.0
  %429 = vmatpush2.msra.mxu0 0.0
  %430 = vmatprep.subr.mxu0 0.0
  %431 = vmatpush2.msra.mxu0 0.0
  %432 = vmatprep.subr.mxu0 0.0
  %433 = vmatpush2.msra.mxu0 0.0
  %434 = vmatprep.subr.mxu0 0.0
  %435 = vmatpush2.msra.mxu0 0.0
  %436 = vmatprep.mubr.f32.mxu0 0.0
  %437 = vmatmul.mubr.f32.gmra.mxu0 %v364
  %v438 = vpop.f32.mrf.mxu0
  %v439 = vadd.f32 0.0, %v438
  %v440 = vpop.f32.mrf.mxu0
  %441 = vmatprep.mubr.f32.mxu0 0.0
  %442 = vmatmul.mubr.f32.gmra.mxu0 %v367
  %v443 = vpop.f32.mrf.mxu0
  %v444 = vadd.f32 0.0, %v443
  %v445 = vpop.f32.mrf.mxu0
  %446 = vdwg.mxu0
  %vm447 = vcmask 64512
  %448 = vst.msk [vmem:[%s4] sm:$0xff] %vm447, %v439
  %vm449 = vcmask 58368
  %450 = vst.msk [vmem:[%s4 + $0x8] sm:$0x3] %vm449, %v444
  // Predicated region
  $region18: #{tpu_custom_call.1} parent=0 // pred_check
    _
  $region19: #{tpu_custom_call.1} parent=0 // pred_check_branch
    %452 = sbr.rel (0) target = $region21
  $region20: #{tpu_custom_call.1} parent=0 // pred_region
    _
  $region21: #{tpu_custom_call.1} parent=0 // pred_fallthru
    _
  // Predicated region
  $region22: #{tpu_custom_call.1} parent=0 // pred_check
    _
  $region23: #{tpu_custom_call.1} parent=0 // pred_check_branch
    %454 = sbr.rel (0) target = $region25
  $region24: #{tpu_custom_call.1} parent=0 // pred_region
    _
  $region25: #{tpu_custom_call.1} parent=0 // pred_fallthru
    _

</llo_original>
